<compile_context>
chip_gen: v5e
topology: v5e:2x2
jax: 0.10.0
libtpu: 0.0.40
codegen_flags: <defaults>
</compile_context>

<pallas_src>
import functools

import numpy as np
import jax
import jax.numpy as jnp
from jax import lax
from jax.experimental import pallas as pl
from jax.experimental.pallas import tpu as pltpu


def _ce_bce_kernel(x_ref, w_ref, b_ref, t_ref, out_ref, part_ref, part_sc, *,
                   n_chunks, chunk, n_sub, tile_n, hw_real, apply_mask):
    # x_ref:    (1, Cp_in,  tile_n)   packed-batch input pixels (lane-dense)
    # w_ref:    (Cp_out, Cp_in)       block-diagonal 1x1-conv weight (resident)
    # b_ref:    (Cp_out, 1)           packed bias (resident)
    # t_ref:    (1, Cp_out, tile_n)   packed targets (narrow dtype, cast here)
    # out_ref:  (1, Cp_out, tile_n)   logits
    # part_ref: (1, 1, Cp_out, 128)   per-step lane-folded partial BCE sums
    # part_sc:  (Cp_out, 128) f32     VMEM scratch accumulator
    w = w_ref[...].astype(jnp.float32)
    b = b_ref[...].astype(jnp.float32)
    s = pl.program_id(1)

    part_sc[...] = jnp.zeros_like(part_sc)

    @pl.loop(0, n_chunks, unroll=(n_chunks <= 8))
    def _(j):
        start = pl.multiple_of(j * chunk, chunk)
        x = x_ref[0, :, pl.ds(start, chunk)].astype(jnp.float32)     # (Cp_in, chunk)
        # 1x1 conv == channel matmul (block-diagonal over packed batches).
        z = jnp.dot(w, x, preferred_element_type=jnp.float32) + b    # (Cp_out, chunk)
        out_ref[0, :, pl.ds(start, chunk)] = z.astype(out_ref.dtype)

        # BCEWithLogitsLoss (numerically stable, elementwise, f32):
        #   max(z, 0) - z*t + log(1 + exp(-|z|))
        t = t_ref[0, :, pl.ds(start, chunk)].astype(jnp.float32)
        per = jnp.maximum(z, 0.0) - z * t + jnp.log1p(jnp.exp(-jnp.abs(z)))

        if apply_mask:  # spatial axis was padded to a lane multiple
            lane = lax.broadcasted_iota(jnp.int32, per.shape, 1)
            gpos = s * tile_n + start + lane
            per = jnp.where(gpos < hw_real, per, 0.0)

        # Fold the chunk into a 128-wide partial: lane-aligned vreg slices,
        # pure VPU adds (no cross-lane XLU reduce, no scalar RMW).
        acc = per[:, 0:128]
        for c in range(1, n_sub):
            acc = acc + per[:, c * 128:(c + 1) * 128]
        part_sc[...] += acc

    part_ref[0, 0, :, :] = part_sc[...]


def _pick_batch_pack(n, cin, cout):
    """Pack bp batch images/step so bp*max(C) fills the 8 f32 sublanes."""
    cmax = max(cin, cout, 1)
    for cand in (8, 4, 2):
        if cand <= n and n % cand == 0 and cand * cmax <= 8:
            return cand
    return 1


def _vmem_capacity_bytes():
    try:
        cap = int(getattr(pltpu.get_tpu_info(), "vmem_capacity_bytes"))
        if cap > 0:
            return cap
    except Exception:
        pass
    return 64 << 20  # v7x-safe fallback


def _pick_tile_n(hw_pad, per_lane_db_bytes, budget_bytes, batch_steps,
                 target_grid=4, hard_cap=65536):
    """Largest multiple-of-128 divisor of hw_pad fitting the VMEM budget,
    shrunk (down to 128) if the grid would have too few steps for megacore."""
    divisors = [d for d in range(128, min(hw_pad, hard_cap) + 1, 128)
                if hw_pad % d == 0]
    if not divisors:
        return hw_pad
    fitting = [d for d in divisors if d * per_lane_db_bytes <= budget_bytes]
    if not fitting:
        fitting = divisors[:1]
    tile = fitting[-1]
    while batch_steps * (hw_pad // tile) < target_grid:
        smaller = [d for d in fitting if d < tile]
        if not smaller:
            break
        tile = smaller[-1]
    return tile


def ce_loss_forward(image_nchw, targets_nchw, weight, bias, *,
                    logits_dtype=jnp.float32, narrow_targets=True):
    """Equivalent of CELoss.forward: returns (output_nchw_f32, scalar_loss)."""
    N, Cin, H, W = image_nchw.shape
    Cout = weight.shape[0]
    HW = H * W

    # --- batch packing (fills sublanes for tiny channel counts) ---
    bp = _pick_batch_pack(N, Cin, Cout)
    Cp_in, Cp_out = bp * Cin, bp * Cout
    batch_steps = N // bp

    # --- pad spatial axis to a lane multiple (keeps stores unmasked) ---
    hw_pad = ((HW + 127) // 128) * 128
    pad = hw_pad - HW

    x = image_nchw.reshape(N, Cin, HW)           # free reshape (spatial last)
    t = targets_nchw.reshape(N, Cout, HW)
    if narrow_targets:
        # Exact for binary {0,1} targets; cuts ~1/3 of streamed HBM bytes.
        t = t.astype(jnp.bfloat16)
    if pad:
        x = jnp.pad(x, ((0, 0), (0, 0), (0, pad)))
        t = jnp.pad(t, ((0, 0), (0, 0), (0, pad)))

    # Free packing reshapes (contiguous memory, no transpose).
    x = x.reshape(batch_steps, Cp_in, hw_pad)
    t = t.reshape(batch_steps, Cp_out, hw_pad)

    # Block-diagonal weight / tiled bias for the packed channel matmul.
    wd = weight if bp == 1 else jnp.kron(jnp.eye(bp, dtype=weight.dtype), weight)
    bd = jnp.tile(bias, (bp,)).reshape(Cp_out, 1)

    # --- VMEM-budget-aware tile size + vmem limit ---
    vmem_cap = _vmem_capacity_bytes()
    budget = int(vmem_cap * 0.45)                # headroom: residents + compiler scratch
    per_lane_db = 2 * (Cp_in * x.dtype.itemsize            # double-buffered x
                       + Cp_out * t.dtype.itemsize          # double-buffered targets
                       + Cp_out * np.dtype(logits_dtype).itemsize)  # double-buffered logits
    tile_n = _pick_tile_n(hw_pad, per_lane_db, budget, batch_steps)
    num_tiles = hw_pad // tile_n

    chunk = 512 if tile_n % 512 == 0 else (256 if tile_n % 256 == 0 else 128)
    chunk = min(chunk, tile_n)
    n_chunks = tile_n // chunk
    n_sub = chunk // 128

    needed = per_lane_db * tile_n + 2 * (Cp_out * 128 * 4) + (2 << 20)
    vmem_limit = int(min(vmem_cap * 0.9, max(needed, 32 << 20)))

    kernel = functools.partial(
        _ce_bce_kernel, n_chunks=n_chunks, chunk=chunk, n_sub=n_sub,
        tile_n=tile_n, hw_real=HW, apply_mask=(pad != 0))

    out_flat, partials = pl.pallas_call(
        kernel,
        grid_spec=pltpu.PrefetchScalarGridSpec(
            num_scalar_prefetch=0,
            grid=(batch_steps, num_tiles),
            in_specs=[
                pl.BlockSpec((1, Cp_in, tile_n), lambda g, s: (g, 0, s)),   # x tile
                pl.BlockSpec((Cp_out, Cp_in), lambda g, s: (0, 0)),         # weight (resident)
                pl.BlockSpec((Cp_out, 1), lambda g, s: (0, 0)),             # bias (resident)
                pl.BlockSpec((1, Cp_out, tile_n), lambda g, s: (g, 0, s)),  # targets
            ],
            out_specs=[
                pl.BlockSpec((1, Cp_out, tile_n), lambda g, s: (g, 0, s)),      # logits
                pl.BlockSpec((1, 1, Cp_out, 128), lambda g, s: (g, s, 0, 0)),   # loss partials
            ],
            scratch_shapes=[pltpu.VMEM((Cp_out, 128), jnp.float32)],
        ),
        out_shape=(
            jax.ShapeDtypeStruct((batch_steps, Cp_out, hw_pad), logits_dtype),
            jax.ShapeDtypeStruct((batch_steps, num_tiles, Cp_out, 128), jnp.float32),
        ),
        compiler_params=pltpu.CompilerParams(
            dimension_semantics=("parallel", "parallel"),  # no carried state -> megacore OK
            vmem_limit_bytes=vmem_limit,
        ),
    )(x, wd, bd, t)

    # Free unpacking reshapes; drop spatial padding if any.
    out = out_flat.reshape(N, Cout, hw_pad)
    if pad:
        out = out[:, :, :HW]
    output = out.reshape(N, Cout, H, W).astype(jnp.float32)

    total_elems = N * Cout * HW
    loss = jnp.sum(partials) / jnp.float32(total_elems)   # mean reduction
    return output, loss


def _reference(image_nchw, targets_nchw, weight, bias):
    """Pure-JAX reference for sanity checking."""
    x = image_nchw.astype(jnp.float32)
    z = jnp.einsum("nchw,oc->nohw", x, weight.astype(jnp.float32))
    z = z + bias.astype(jnp.float32)[None, :, None, None]
    t = targets_nchw.astype(jnp.float32)
    per = jnp.maximum(z, 0.0) - z * t + jnp.log1p(jnp.exp(-jnp.abs(z)))
    return z, jnp.mean(per)


if __name__ == "__main__":
    # Small shapes consistent with the module's forward: NCHW image + same-shape targets.
    N, Cin, H, W = 2, 4, 16, 16
    Cout = 4

    key = jax.random.PRNGKey(0)
    k_img, k_tgt, k_w, k_b = jax.random.split(key, 4)

    image = jax.random.normal(k_img, (N, Cin, H, W), dtype=jnp.float32)
    targets = (jax.random.uniform(k_tgt, (N, Cout, H, W)) > 0.5).astype(jnp.float32)

    # Deterministic synthetic "model" parameters: 1x1 conv weight (Cout, Cin) + bias (Cout,).
    weight = jax.random.normal(k_w, (Cout, Cin), dtype=jnp.float32) * 0.1
    bias = jax.random.normal(k_b, (Cout,), dtype=jnp.float32) * 0.1

    output, loss = ce_loss_forward(image, targets, weight, bias)
    jax.block_until_ready((output, loss))

    ref_out, ref_loss = _reference(image, targets, weight, bias)
    assert output.shape == (N, Cout, H, W)
    assert jnp.allclose(output, ref_out, atol=1e-5, rtol=1e-5)
    assert jnp.allclose(loss, ref_loss, atol=1e-5, rtol=1e-5)

    print("KERNEL_OK")
</pallas_src>

<mosaic_0001>
module attributes {stable_mosaic.version = 11 : i64} {
  func.func @_ce_bce_kernel(%arg0: i32, %arg1: i32, %arg2: memref<1x8x128xf32, #tpu.memory_space<vmem>>, %arg3: memref<8x8xf32, #tpu.memory_space<vmem>>, %arg4: memref<8x1xf32, #tpu.memory_space<vmem>>, %arg5: memref<1x8x128xbf16, #tpu.memory_space<vmem>>, %arg6: memref<1x8x128xf32, #tpu.memory_space<vmem>>, %arg7: memref<1x1x8x128xf32, #tpu.memory_space<vmem>>, %arg8: memref<8x128xf32, #tpu.memory_space<vmem>>) attributes {dimension_semantics = [#tpu.dimension_semantics<parallel>, #tpu.dimension_semantics<parallel>], iteration_bounds = array<i64: 1, 2>, scalar_prefetch = 0 : i64, scratch_operands = 1 : i64, tpu.core_type = #tpu.core_type<tc>, window_params = [{transform_indices = @transform_0, window_bounds = array<i64: 1, 8, 128>}, {pipeline_mode = #tpu.pipeline_mode<synchronous>, transform_indices = @transform_1, window_bounds = array<i64: 8, 8>}, {pipeline_mode = #tpu.pipeline_mode<synchronous>, transform_indices = @transform_2, window_bounds = array<i64: 8, 1>}, {transform_indices = @transform_3, window_bounds = array<i64: 1, 8, 128>}, {transform_indices = @transform_4, window_bounds = array<i64: 1, 8, 128>}, {transform_indices = @transform_5, window_bounds = array<i64: 1, 1, 8, 128>}]} {
    %c0 = arith.constant 0 : index
    %c0_0 = arith.constant 0 : index
    %0 = vector.load %arg3[%c0, %c0_0] : memref<8x8xf32, #tpu.memory_space<vmem>>, vector<8x8xf32>
    %c0_1 = arith.constant 0 : index
    %c0_2 = arith.constant 0 : index
    %1 = vector.load %arg4[%c0_1, %c0_2] : memref<8x1xf32, #tpu.memory_space<vmem>>, vector<8x1xf32>
    %cst = arith.constant 0.000000e+00 : f32
    %2 = vector.broadcast %cst : f32 to vector<8x128xf32>
    %c0_3 = arith.constant 0 : index
    %c0_4 = arith.constant 0 : index
    %3 = vector.load %arg8[%c0_3, %c0_4] : memref<8x128xf32, #tpu.memory_space<vmem>>, vector<8x128xf32>
    tpu.vector_store %arg8[%c0_3, %c0_4], %2 {strides = array<i32>} : memref<8x128xf32, #tpu.memory_space<vmem>>, vector<8x128xf32>,
    %c0_i32 = arith.constant 0 : i32
    %c1_i32 = arith.constant 1 : i32
    %4 = arith.muli %c0_i32, %c1_i32 : i32
    %c0_i32_5 = arith.constant 0 : i32
    %5 = arith.addi %c0_i32_5, %4 : i32
    %c128_i32 = arith.constant 128 : i32
    %6 = arith.muli %5, %c128_i32 : i32
    %7 = tpu.assume_multiple %6, 128 : i32
    %c0_6 = arith.constant 0 : index
    %c0_7 = arith.constant 0 : index
    %8 = arith.index_cast %7 : i32 to index
    %9 = vector.load %arg2[%c0_6, %c0_7, %8] : memref<1x8x128xf32, #tpu.memory_space<vmem>>, vector<1x8x128xf32>
    %10 = vector.shape_cast %9 : vector<1x8x128xf32> to vector<8x128xf32>
    %cst_8 = arith.constant dense<0.000000e+00> : vector<8x128xf32>
    %11 = tpu.matmul %0, %10, %cst_8 {dimension_numbers = #tpu.dot_dimension_numbers<[1], [0], [0], [1], [0, 0, 1, 1], [], []>} : vector<8x8xf32>, vector<8x128xf32>, vector<8x128xf32> -> vector<8x128xf32>
    %12 = vector.broadcast %1 : vector<8x1xf32> to vector<8x128xf32>
    %13 = arith.addf %11, %12 : vector<8x128xf32>
    %c0_9 = arith.constant 0 : index
    %c0_10 = arith.constant 0 : index
    %14 = arith.index_cast %7 : i32 to index
    %15 = vector.load %arg6[%c0_9, %c0_10, %14] : memref<1x8x128xf32, #tpu.memory_space<vmem>>, vector<1x8x128xf32>
    %16 = vector.shape_cast %15 : vector<1x8x128xf32> to vector<8x128xf32>
    %17 = vector.shape_cast %13 : vector<8x128xf32> to vector<1x8x128xf32>
    tpu.vector_store %arg6[%c0_9, %c0_10, %14], %17 {strides = array<i32>} : memref<1x8x128xf32, #tpu.memory_space<vmem>>, vector<1x8x128xf32>,
    %c0_11 = arith.constant 0 : index
    %c0_12 = arith.constant 0 : index
    %18 = arith.index_cast %7 : i32 to index
    %19 = vector.load %arg5[%c0_11, %c0_12, %18] : memref<1x8x128xbf16, #tpu.memory_space<vmem>>, vector<1x8x128xbf16>
    %20 = vector.shape_cast %19 : vector<1x8x128xbf16> to vector<8x128xbf16>
    %21 = arith.extf %20 : vector<8x128xbf16> to vector<8x128xf32>
    %cst_13 = arith.constant 0.000000e+00 : f32
    %22 = vector.broadcast %cst_13 : f32 to vector<8x128xf32>
    %23 = arith.maximumf %13, %22 : vector<8x128xf32>
    %24 = arith.mulf %13, %21 : vector<8x128xf32>
    %25 = arith.subf %23, %24 : vector<8x128xf32>
    %26 = math.absf %13 : vector<8x128xf32>
    %cst_14 = arith.constant 0.000000e+00 : f32
    %27 = vector.broadcast %cst_14 : f32 to vector<8x128xf32>
    %28 = arith.subf %27, %26 : vector<8x128xf32>
    %29 = math.exp %28 : vector<8x128xf32>
    %30 = math.log1p %29 : vector<8x128xf32>
    %31 = arith.addf %25, %30 : vector<8x128xf32>
    %c0_15 = arith.constant 0 : index
    %c0_16 = arith.constant 0 : index
    %32 = vector.load %arg8[%c0_15, %c0_16] : memref<8x128xf32, #tpu.memory_space<vmem>>, vector<8x128xf32>
    %33 = arith.addf %32, %31 : vector<8x128xf32>
    %c0_17 = arith.constant 0 : index
    %c0_18 = arith.constant 0 : index
    %34 = vector.load %arg8[%c0_17, %c0_18] : memref<8x128xf32, #tpu.memory_space<vmem>>, vector<8x128xf32>
    tpu.vector_store %arg8[%c0_17, %c0_18], %33 {strides = array<i32>} : memref<8x128xf32, #tpu.memory_space<vmem>>, vector<8x128xf32>,
    %c1_i32_19 = arith.constant 1 : i32
    %c0_20 = arith.constant 0 : index
    %c0_21 = arith.constant 0 : index
    %35 = vector.load %arg8[%c0_20, %c0_21] : memref<8x128xf32, #tpu.memory_space<vmem>>, vector<8x128xf32>
    %c0_22 = arith.constant 0 : index
    %c0_23 = arith.constant 0 : index
    %c0_24 = arith.constant 0 : index
    %c0_25 = arith.constant 0 : index
    %36 = vector.load %arg7[%c0_22, %c0_23, %c0_24, %c0_25] : memref<1x1x8x128xf32, #tpu.memory_space<vmem>>, vector<1x1x8x128xf32>
    %37 = vector.shape_cast %36 : vector<1x1x8x128xf32> to vector<8x128xf32>
    %38 = vector.shape_cast %35 : vector<8x128xf32> to vector<1x1x8x128xf32>
    tpu.vector_store %arg7[%c0_22, %c0_23, %c0_24, %c0_25], %38 {strides = array<i32>} : memref<1x1x8x128xf32, #tpu.memory_space<vmem>>, vector<1x1x8x128xf32>,
    return
  }
  func.func @transform_0(%arg0: i32, %arg1: i32) -> (i32, i32, i32) {
    %c0_i32 = arith.constant 0 : i32
    %c0_i32_0 = arith.constant 0 : i32
    return %arg0, %c0_i32, %arg1 : i32, i32, i32
  }
  func.func @transform_1(%arg0: i32, %arg1: i32) -> (i32, i32) {
    %c0_i32 = arith.constant 0 : i32
    %c0_i32_0 = arith.constant 0 : i32
    %c0_i32_1 = arith.constant 0 : i32
    return %c0_i32, %c0_i32_0 : i32, i32
  }
  func.func @transform_2(%arg0: i32, %arg1: i32) -> (i32, i32) {
    %c0_i32 = arith.constant 0 : i32
    %c0_i32_0 = arith.constant 0 : i32
    %c0_i32_1 = arith.constant 0 : i32
    return %c0_i32, %c0_i32_0 : i32, i32
  }
  func.func @transform_3(%arg0: i32, %arg1: i32) -> (i32, i32, i32) {
    %c0_i32 = arith.constant 0 : i32
    %c0_i32_0 = arith.constant 0 : i32
    return %arg0, %c0_i32, %arg1 : i32, i32, i32
  }
  func.func @transform_4(%arg0: i32, %arg1: i32) -> (i32, i32, i32) {
    %c0_i32 = arith.constant 0 : i32
    %c0_i32_0 = arith.constant 0 : i32
    return %arg0, %c0_i32, %arg1 : i32, i32, i32
  }
  func.func @transform_5(%arg0: i32, %arg1: i32) -> (i32, i32, i32, i32) {
    %c0_i32 = arith.constant 0 : i32
    %c0_i32_0 = arith.constant 0 : i32
    %c0_i32_1 = arith.constant 0 : i32
    return %arg0, %arg1, %c0_i32, %c0_i32_0 : i32, i32, i32, i32
  }
}

</mosaic_0001>

<llo_original>
// kernel: tpu_custom_call.1
$region0: #{tpu_custom_call.1}
  #allocation0 [shape = 'u32[]', space=smem, size = 0x4, offset = 0x4, fixed_abs, tag = 'smem constant byte address 0x4 - core index']
  #allocation1 [shape = 'u32[72,128]{1,0:T(1,128)}', space=vmem, size = 0x9000, scoped, tag = 'internal scratch']
  #allocation2 [shape = 'f32[8,128]{1,0:T(8,128)}', space=vmem, size = 0x1000, scoped, tag = 'scratch operand']
  %s0 = inlined_call_operand.hbm [shape: f32[1,8,256], index: 0, kind: input, shape index: {}]
  %s1 = inlined_call_operand.vmem [shape: f32[8,8], index: 1, kind: input, shape index: {}]
  %s2 = inlined_call_operand.vmem [shape: f32[8,1], index: 2, kind: input, shape index: {}]
  %s3 = inlined_call_operand.hbm [shape: bf16[1,8,256], index: 3, kind: input, shape index: {}]
  %s4 = inlined_call_operand.hbm [shape: f32[1,8,256], index: 4, kind: output, shape index: {0}]
  %s5 = inlined_call_operand.hbm [shape: f32[1,2,8,128], index: 5, kind: output, shape index: {1}]
  %6 = xla_tuple %s4, %s5
  %s7 = sld [smem:[#allocation0]]
  $region65: #{tpu_custom_call.1} parent=0
    _
  %s9 = ssub.s32 1, %s7
  %s10 = scalar_select 0, %s9, %s7
  $region1: #{tpu_custom_call.1} parent=0
    #allocation3 [shape = 'u8[8192]{0}', space=vmem, size = 0x2000, scoped, tag = 'input window, operand 0']
    #allocation4 [shape = 's32[2]{0}', space=sflag, size = 0x8, scoped, tag = 'scoped memory for tpu_custom_call.1']
    #allocation5 [shape = 's32[2]{0}', space=sflag, size = 0x8, scoped, tag = 'scoped memory for tpu_custom_call.1']
    #allocation6 [shape = 'u8[4096]{0}', space=vmem, size = 0x1000, scoped, tag = 'input window, operand 3']
    #allocation7 [shape = 's32[2]{0}', space=sflag, size = 0x8, scoped, tag = 'scoped memory for tpu_custom_call.1']
    #allocation8 [shape = 'u8[8192]{0}', space=vmem, size = 0x2000, scoped, tag = 'output window, operand 0']
    #allocation9 [shape = 'u8[8192]{0}', space=vmem, size = 0x2000, scoped, tag = 'output window, operand 1']
    #allocation10 [shape = 's32[2]{0}', space=sflag, size = 0x8, scoped, tag = 'scoped memory for tpu_custom_call.1']
    %11 = vsyncpa [#allocation4], 0
    %s12 = scalar_lea.sflag [#allocation4], 1
    %13 = vsyncpa %s12, 0
    %14 = vsyncpa [#allocation7], 0
    %s15 = scalar_lea.sflag [#allocation7], 1
    %16 = vsyncpa %s15, 0
    %17 = vsyncpa [#allocation5], 0
    %s18 = scalar_lea.sflag [#allocation5], 1
    %19 = vsyncpa %s18, 0
    %20 = vsyncpa [#allocation10], 0
    %s21 = scalar_lea.sflag [#allocation10], 1
    %22 = vsyncpa %s21, 0
    loop: start=0, step=1, limit=4
    $region2: #{tpu_custom_call.1} parent=1 // loop_pre_header
      _
    $region3: #{tpu_custom_call.1} parent=1 // loop_header
      %s24 = sphi 0, %s28
      %p25 = scmp.ge.s32.totalorder %s24, 4
      %s31 = sphi 0, %s43
      %s32 = sphi 0, %s39
      %s33 = sphi 0, %s31
      %s34 = sphi 0, %s32
      %s35 = sphi 0, %s33
      %s36 = sphi 0, %s34
      %s48 = sphi 0, %s50
      %s51 = sphi 0, %s48
      %s52 = sphi 0, %s51
      %s68 = sphi 0, %s52
      %s72 = sphi 0, %s72
      %s74 = sphi 0, %s72
      %s75 = sphi 0, %s74
      %s89 = sphi 0, %s75
      %s93 = sphi 0, %s93
      %s95 = sphi 0, %s93
      %s96 = sphi 0, %s95
      %s110 = sphi 0, %s96
      %s118 = sphi 0, %s120
      %s121 = sphi 0, %s118
      %s122 = sphi 0, %s121
      %s138 = sphi 0, %s122
      %s146 = sphi 0, %s148
      %s149 = sphi 0, %s146
      %s150 = sphi 0, %s149
      %s166 = sphi 0, %s150
      %s174 = sphi 0, %s176
      %s177 = sphi 0, %s174
      %s178 = sphi 0, %s177
      %s194 = sphi 0, %s178
    $region4: #{tpu_custom_call.1} parent=1 // loop_header_branch
      %27 = sbr.rel (%p25) target = $region8
    $region5: #{tpu_custom_call.1} parent=1 // loop_body
      %s29 = ssub.s32 %s24, 1
      %s30 = ssub.s32 %s24, 2
      %s37 = sadd.s32 1, %s32
      %p38 = scmp.ge.s32.totalorder %s37, 2
      %s39 = scalar_select %p38, 0, %s37
      %s40 = sadd.s32 1, %s31
      %s41 = scalar_select %p38, %s40, %s31
      %p42 = scmp.ge.s32.totalorder %s41, 1
      %s43 = scalar_select %p42, 0, %s41
      %s44 = ssub.s32 %s31, %s43
      %s45 = ssub.s32 %s32, %s39
      %s46 = sor.u32 %s44, %s45
      %p47 = scmp.eq.s32.totalorder %s46, 0
      %s49 = sadd.s32 %s48, 1
      %s50 = scalar_select %p47, %s48, %s49
      %p53 = pneg %p47
      %p54 = scmp.eq.s32.totalorder %s24, 1
      %p55 = por %p53, %p54
      %p56 = scmp.ne.s32.totalorder %s48, %s51
      %p57 = scmp.eq.s32.totalorder %s24, 0
      %p58 = por %p56, %p57
      %p59 = scmp.ne.s32.totalorder %s48, %s51
      %p60 = scmp.eq.s32.totalorder %s29, 1
      %p61 = por %p59, %p60
      %p62 = scmp.ne.s32.totalorder %s51, %s52
      %p63 = scmp.eq.s32.totalorder %s29, 0
      %p64 = por %p62, %p63
      %p65 = scmp.ne.s32.totalorder %s51, %s52
      %p66 = scmp.eq.s32.totalorder %s30, 1
      %p67 = por %p65, %p66
      %p69 = scmp.ne.s32.totalorder %s52, %s68
      %p70 = scmp.eq.s32.totalorder %s30, 0
      %p71 = por %p69, %p70
      %s73 = sadd.s32 %s72, 1
      %p76 = scmp.eq.s32.totalorder %s24, 1
      %p77 = scmp.ne.s32.totalorder %s72, %s74
      %p78 = scmp.eq.s32.totalorder %s24, 0
      %p79 = por %p77, %p78
      %p80 = scmp.ne.s32.totalorder %s72, %s74
      %p81 = scmp.eq.s32.totalorder %s29, 1
      %p82 = por %p80, %p81
      %p83 = scmp.ne.s32.totalorder %s74, %s75
      %p84 = scmp.eq.s32.totalorder %s29, 0
      %p85 = por %p83, %p84
      %p86 = scmp.ne.s32.totalorder %s74, %s75
      %p87 = scmp.eq.s32.totalorder %s30, 1
      %p88 = por %p86, %p87
      %p90 = scmp.ne.s32.totalorder %s75, %s89
      %p91 = scmp.eq.s32.totalorder %s30, 0
      %p92 = por %p90, %p91
      %s94 = sadd.s32 %s93, 1
      %p97 = scmp.eq.s32.totalorder %s24, 1
      %p98 = scmp.ne.s32.totalorder %s93, %s95
      %p99 = scmp.eq.s32.totalorder %s24, 0
      %p100 = por %p98, %p99
      %p101 = scmp.ne.s32.totalorder %s93, %s95
      %p102 = scmp.eq.s32.totalorder %s29, 1
      %p103 = por %p101, %p102
      %p104 = scmp.ne.s32.totalorder %s95, %s96
      %p105 = scmp.eq.s32.totalorder %s29, 0
      %p106 = por %p104, %p105
      %p107 = scmp.ne.s32.totalorder %s95, %s96
      %p108 = scmp.eq.s32.totalorder %s30, 1
      %p109 = por %p107, %p108
      %p111 = scmp.ne.s32.totalorder %s96, %s110
      %p112 = scmp.eq.s32.totalorder %s30, 0
      %p113 = por %p111, %p112
      %s114 = ssub.s32 %s31, %s43
      %s115 = ssub.s32 %s32, %s39
      %s116 = sor.u32 %s114, %s115
      %p117 = scmp.eq.s32.totalorder %s116, 0
      %s119 = sadd.s32 %s118, 1
      %s120 = scalar_select %p117, %s118, %s119
      %p123 = pneg %p117
      %p124 = scmp.eq.s32.totalorder %s24, 1
      %p125 = por %p123, %p124
      %p126 = scmp.ne.s32.totalorder %s118, %s121
      %p127 = scmp.eq.s32.totalorder %s24, 0
      %p128 = por %p126, %p127
      %p129 = scmp.ne.s32.totalorder %s118, %s121
      %p130 = scmp.eq.s32.totalorder %s29, 1
      %p131 = por %p129, %p130
      %p132 = scmp.ne.s32.totalorder %s121, %s122
      %p133 = scmp.eq.s32.totalorder %s29, 0
      %p134 = por %p132, %p133
      %p135 = scmp.ne.s32.totalorder %s121, %s122
      %p136 = scmp.eq.s32.totalorder %s30, 1
      %p137 = por %p135, %p136
      %p139 = scmp.ne.s32.totalorder %s122, %s138
      %p140 = scmp.eq.s32.totalorder %s30, 0
      %p141 = por %p139, %p140
      %s142 = ssub.s32 %s31, %s43
      %s143 = ssub.s32 %s32, %s39
      %s144 = sor.u32 %s142, %s143
      %p145 = scmp.eq.s32.totalorder %s144, 0
      %s147 = sadd.s32 %s146, 1
      %s148 = scalar_select %p145, %s146, %s147
      %p151 = pneg %p145
      %p152 = scmp.eq.s32.totalorder %s24, 1
      %p153 = por %p151, %p152
      %p154 = scmp.ne.s32.totalorder %s146, %s149
      %p155 = scmp.eq.s32.totalorder %s24, 0
      %p156 = por %p154, %p155
      %p157 = scmp.ne.s32.totalorder %s146, %s149
      %p158 = scmp.eq.s32.totalorder %s29, 1
      %p159 = por %p157, %p158
      %p160 = scmp.ne.s32.totalorder %s149, %s150
      %p161 = scmp.eq.s32.totalorder %s29, 0
      %p162 = por %p160, %p161
      %p163 = scmp.ne.s32.totalorder %s149, %s150
      %p164 = scmp.eq.s32.totalorder %s30, 1
      %p165 = por %p163, %p164
      %p167 = scmp.ne.s32.totalorder %s150, %s166
      %p168 = scmp.eq.s32.totalorder %s30, 0
      %p169 = por %p167, %p168
      %s170 = ssub.s32 %s31, %s43
      %s171 = ssub.s32 %s32, %s39
      %s172 = sor.u32 %s170, %s171
      %p173 = scmp.eq.s32.totalorder %s172, 0
      %s175 = sadd.s32 %s174, 1
      %s176 = scalar_select %p173, %s174, %s175
      %p179 = pneg %p173
      %p180 = scmp.eq.s32.totalorder %s24, 1
      %p181 = por %p179, %p180
      %p182 = scmp.ne.s32.totalorder %s174, %s177
      %p183 = scmp.eq.s32.totalorder %s24, 0
      %p184 = por %p182, %p183
      %p185 = scmp.ne.s32.totalorder %s174, %s177
      %p186 = scmp.eq.s32.totalorder %s29, 1
      %p187 = por %p185, %p186
      %p188 = scmp.ne.s32.totalorder %s177, %s178
      %p189 = scmp.eq.s32.totalorder %s29, 0
      %p190 = por %p188, %p189
      %p191 = scmp.ne.s32.totalorder %s177, %s178
      %p192 = scmp.eq.s32.totalorder %s30, 1
      %p193 = por %p191, %p192
      %p195 = scmp.ne.s32.totalorder %s178, %s194
      %p196 = scmp.eq.s32.totalorder %s30, 0
      %p197 = por %p195, %p196
      %p198 = scmp.le.s32.totalorder 1, %s24
      %p199 = scmp.lt.s32.totalorder %s24, 3
      %p200 = pnand %p198, %p199
      %p201 = pneg %p200
      // Predicated region
      $region9: #{tpu_custom_call.1} parent=5 // pred_check
        _
      $region10: #{tpu_custom_call.1} parent=5 // pred_check_branch
        %203 = sbr.rel (%p200) target = $region12
      $region11: #{tpu_custom_call.1} parent=5 // pred_region
        %s204 = ssub.s32 %s24, 1
        // Predicated region
        $region13: #{tpu_custom_call.1} parent=11 // pred_check
          %p205 = pneg %p85
        $region14: #{tpu_custom_call.1} parent=11 // pred_check_branch
          %207 = sbr.rel (%p205) target = $region16
        $region15: #{tpu_custom_call.1} parent=11 // pred_region
          _
        $region16: #{tpu_custom_call.1} parent=11 // pred_fallthru
          _
        // Predicated region
        $region17: #{tpu_custom_call.1} parent=11 // pred_check
          %p208 = pneg %p106
        $region18: #{tpu_custom_call.1} parent=11 // pred_check_branch
          %210 = sbr.rel (%p208) target = $region20
        $region19: #{tpu_custom_call.1} parent=11 // pred_region
          _
        $region20: #{tpu_custom_call.1} parent=11 // pred_fallthru
          _
      $region12: #{tpu_custom_call.1} parent=5 // pred_fallthru
        _
      %p211 = scmp.lt.s32.totalorder %s24, 2
      // Predicated region
      $region21: #{tpu_custom_call.1} parent=5 // pred_check
        %p212 = pneg %p211
      $region22: #{tpu_custom_call.1} parent=5 // pred_check_branch
        %214 = sbr.rel (%p212) target = $region24
      $region23: #{tpu_custom_call.1} parent=5 // pred_region
        // Predicated region
        $region25: #{tpu_custom_call.1} parent=23 // pred_check
          %p215 = pneg %p58
        $region26: #{tpu_custom_call.1} parent=23 // pred_check_branch
          %217 = sbr.rel (%p215) target = $region28
        $region27: #{tpu_custom_call.1} parent=23 // pred_region
          %s218 = sand.u32 %s48, 1
          %s219 = scalar_lea.sflag [#allocation4], %s218
          %s220 = sand.u32 %s48, 1
          %s221 = smul.addr %s220, 8
          %s222 = scalar_lea.vmem [#allocation3], %s221
          %224 = vsyncadd %s219, 0
          %s225 = smul.addr %s31, 2
          %s226 = sadd.s32 %s32, %s225
          %s227 = smul.addr %s226, 8
          %s228 = scalar_lea.hbm %s0, %s227
          %s230 = sshll.u32 %s228, 4
          %s231 = int_to_ptr.hbm [resolvable:$true] %s230
          %s232 = sshll.u32 %s222, 4
          %s233 = int_to_ptr.vmem [resolvable:$true] %s232
          %235 = dma.hbm_to_vmem [thread:$0]  %s231, 128, %s233, %s219
        $region28: #{tpu_custom_call.1} parent=23 // pred_fallthru
          _
        // Predicated region
        $region29: #{tpu_custom_call.1} parent=23 // pred_check
          %p236 = pneg %p128
        $region30: #{tpu_custom_call.1} parent=23 // pred_check_branch
          %238 = sbr.rel (%p236) target = $region32
        $region31: #{tpu_custom_call.1} parent=23 // pred_region
          %s239 = sand.u32 %s118, 1
          %s240 = scalar_lea.sflag [#allocation7], %s239
          %s241 = sand.u32 %s118, 1
          %s242 = smul.addr %s241, 4
          %s243 = scalar_lea.vmem [#allocation6], %s242
          %245 = vsyncadd %s240, 0
          %s246 = smul.addr %s31, 2
          %s247 = sadd.s32 %s32, %s246
          %s248 = smul.addr %s247, 4
          %s249 = scalar_lea.hbm %s3, %s248
          %s251 = sshll.u32 %s249, 4
          %s252 = int_to_ptr.hbm [resolvable:$true] %s251
          %s253 = sshll.u32 %s243, 4
          %s254 = int_to_ptr.vmem [resolvable:$true] %s253
          %256 = dma.hbm_to_vmem [thread:$0]  %s252, 64, %s254, %s240
        $region32: #{tpu_custom_call.1} parent=23 // pred_fallthru
          _
      $region24: #{tpu_custom_call.1} parent=5 // pred_fallthru
        _
      %p257 = scmp.le.s32.totalorder 1, %s24
      %p258 = scmp.lt.s32.totalorder %s24, 3
      %p259 = pnand %p257, %p258
      %p260 = pneg %p259
      // Predicated region
      $region33: #{tpu_custom_call.1} parent=5 // pred_check
        _
      $region34: #{tpu_custom_call.1} parent=5 // pred_check_branch
        %262 = sbr.rel (%p259) target = $region36
      $region35: #{tpu_custom_call.1} parent=5 // pred_region
        %s263 = ssub.s32 %s24, 1
        %s264 = sand.u32 %s51, 1
        %s265 = scalar_lea.sflag [#allocation4], %s264
        %s266 = sand.u32 %s51, 1
        %s267 = smul.addr %s266, 8
        %s268 = scalar_lea.vmem [#allocation3], %s267
        // Predicated region
        $region37: #{tpu_custom_call.1} parent=35 // pred_check
          %p269 = pneg %p64
        $region38: #{tpu_custom_call.1} parent=35 // pred_check_branch
          %271 = sbr.rel (%p269) target = $region40
        $region39: #{tpu_custom_call.1} parent=35 // pred_region
          %273 = dma.done %s265, 128
        $region40: #{tpu_custom_call.1} parent=35 // pred_fallthru
          _
        %s274 = sand.u32 %s121, 1
        %s275 = scalar_lea.sflag [#allocation7], %s274
        %s276 = sand.u32 %s121, 1
        %s277 = smul.addr %s276, 4
        %s278 = scalar_lea.vmem [#allocation6], %s277
        // Predicated region
        $region41: #{tpu_custom_call.1} parent=35 // pred_check
          %p279 = pneg %p134
        $region42: #{tpu_custom_call.1} parent=35 // pred_check_branch
          %281 = sbr.rel (%p279) target = $region44
        $region43: #{tpu_custom_call.1} parent=35 // pred_region
          %283 = dma.done %s275, 64
        $region44: #{tpu_custom_call.1} parent=35 // pred_fallthru
          _
        %s284 = sand.u32 %s51, 1
        %s285 = scalar_lea.sflag [#allocation4], %s284
        %s286 = sand.u32 %s51, 1
        %s287 = smul.addr %s286, 8
        %s288 = scalar_lea.vmem [#allocation3], %s287
        %p289 = pneg %p64
        %p290 = pneg %p61
        %p291 = pneg %p85
        %p292 = pneg %p82
        %p293 = pneg %p106
        %p294 = pneg %p103
        %s295 = sand.u32 %s121, 1
        %s296 = scalar_lea.sflag [#allocation7], %s295
        %s297 = sand.u32 %s121, 1
        %s298 = smul.addr %s297, 4
        %s299 = scalar_lea.vmem [#allocation6], %s298
        %p300 = pneg %p134
        %p301 = pneg %p131
        %p302 = pneg %p162
        %p303 = pneg %p159
        %s304 = sand.u32 %s149, 1
        %s305 = scalar_lea.sflag [#allocation5], %s304
        %s306 = sand.u32 %s149, 1
        %s307 = smul.addr %s306, 8
        %s308 = scalar_lea.vmem [#allocation8], %s307
        %p309 = pneg %p190
        %p310 = pneg %p187
        %s311 = sand.u32 %s177, 1
        %s312 = scalar_lea.sflag [#allocation10], %s311
        %s313 = sand.u32 %s177, 1
        %s314 = smul.addr %s313, 8
        %s315 = scalar_lea.vmem [#allocation9], %s314
        %v316 = vld [vmem:[%s1] sm:$0xff]
        %v317 = vld [vmem:[%s2] sm:$0xff]
        %318 = vst [vmem:[#allocation2] sm:$0xff] 0.0
        %v319 = vld [vmem:[%s268] sm:$0xff]
        %321 = vset.pattern.permute.xlu0 0
        %322 = vperm.xlu0 %321, %v317
        %v323 = vpop.permute.xlu0 %322
        %vm325 = vcmask 64512
        %v327 = vsel %vm325, %v316, 0
        %329 = vmatpush.msra.mxu0 0.0
        %330 = vmatpush.msra.mxu0 0.0
        %331 = vmatpush.msra.mxu0 0.0
        %332 = vmatpush.msra.mxu0 0.0
        %333 = vmatpush.msra.mxu0 0.0
        %334 = vmatpush.msra.mxu0 0.0
        %335 = vmatpush.msra.mxu0 0.0
        %336 = vmatpush.msra.mxu0 0.0
        %337 = vmatpush.msra.mxu0 0.0
        %338 = vmatpush.msra.mxu0 0.0
        %339 = vmatpush.msra.mxu0 0.0
        %340 = vmatpush.msra.mxu0 0.0
        %341 = vmatpush.msra.mxu0 0.0
        %342 = vmatpush.msra.mxu0 0.0
        %343 = vmatpush.msra.mxu0 0.0
        %344 = vmatpush.msra.mxu0 %v319
        %345 = vmatmul.f32.gmra.mxu0 %v327
        %v346 = vpop.f32.mrf.mxu0
        %v347 = vadd.f32 %v323, %v346
        %348 = vdwg.mxu0
        %349 = vst [vmem:[%s308] sm:$0xff] %v347
        %v350 = vld [vmem:[%s278] sm:$0xf]
        %v351 = vunpack.c.l.bf16 %v350
        %v352 = vmax.f32 %v347, 0.0
        %v353 = vmul.f32 %v347, %v351
        %v354 = vsub.f32 %v352, %v353
        %v355 = vand.u32 2147483647, %v347
        %v356 = vsub.f32 0.0, %v355
        %v357 = vmul.f32 %v356, 1.442695
        %v358 = vpow.pop %v357
        %v359 = vadd.f32 %v358, 1.0
        %v360 = vlog2.pop %v359
        %v361 = vmul.f32 %v360, 0.6931472
        %v362 = vmul.f32 -0.5, %v358
        %v363 = vadd.f32 %v362, 1.0
        %v364 = vmul.f32 %v363, %v358
        %v365 = vand.u32 2147483647, %v358
        %vm366 = vcmp.lt.f32.partialorder %v365, 0.0004427343
        %v367 = vsel %vm366, %v364, %v361
        %v368 = vadd.f32 %v354, %v367
        %v369 = vld [vmem:[#allocation2] sm:$0xff]
        %v370 = vadd.f32 %v369, %v368
        %371 = vst [vmem:[#allocation2] sm:$0xff] %v370
        %v372 = vld [vmem:[#allocation2] sm:$0xff]
        %373 = vst [vmem:[%s315] sm:$0xff] %v372
        %s374 = sand.u32 %s149, 1
        %s375 = scalar_lea.sflag [#allocation5], %s374
        %s376 = sand.u32 %s149, 1
        %s377 = smul.addr %s376, 8
        %s378 = scalar_lea.vmem [#allocation8], %s377
        %s379 = sand.u32 %s177, 1
        %s380 = scalar_lea.sflag [#allocation10], %s379
        %s381 = sand.u32 %s177, 1
        %s382 = smul.addr %s381, 8
        %s383 = scalar_lea.vmem [#allocation9], %s382
        // Predicated region
        $region45: #{tpu_custom_call.1} parent=35 // pred_check
          %p384 = pneg %p159
        $region46: #{tpu_custom_call.1} parent=35 // pred_check_branch
          %386 = sbr.rel (%p384) target = $region48
        $region47: #{tpu_custom_call.1} parent=35 // pred_region
          %388 = vsyncadd %s375, 0
          %s389 = smul.addr %s33, 2
          %s390 = sadd.s32 %s34, %s389
          %s391 = smul.addr %s390, 8
          %s392 = scalar_lea.hbm %s4, %s391
          %s394 = sshll.u32 %s378, 4
          %s395 = int_to_ptr.vmem [resolvable:$true] %s394
          %s396 = sshll.u32 %s392, 4
          %s397 = int_to_ptr.hbm [resolvable:$true] %s396
          %399 = dma.vmem_to_hbm [thread:$0]  %s395, 128, %s397, %s375
        $region48: #{tpu_custom_call.1} parent=35 // pred_fallthru
          _
        // Predicated region
        $region49: #{tpu_custom_call.1} parent=35 // pred_check
          %p400 = pneg %p187
        $region50: #{tpu_custom_call.1} parent=35 // pred_check_branch
          %402 = sbr.rel (%p400) target = $region52
        $region51: #{tpu_custom_call.1} parent=35 // pred_region
          %404 = vsyncadd %s380, 0
          %s405 = smul.addr %s33, 2
          %s406 = sadd.s32 %s34, %s405
          %s407 = smul.addr %s406, 8
          %s408 = scalar_lea.hbm %s5, %s407
          %s410 = sshll.u32 %s383, 4
          %s411 = int_to_ptr.vmem [resolvable:$true] %s410
          %s412 = sshll.u32 %s408, 4
          %s413 = int_to_ptr.hbm [resolvable:$true] %s412
          %415 = dma.vmem_to_hbm [thread:$0]  %s411, 128, %s413, %s380
        $region52: #{tpu_custom_call.1} parent=35 // pred_fallthru
          _
      $region36: #{tpu_custom_call.1} parent=5 // pred_fallthru
        _
      %p416 = scmp.le.s32.totalorder 2, %s24
      // Predicated region
      $region53: #{tpu_custom_call.1} parent=5 // pred_check
        %p417 = pneg %p416
      $region54: #{tpu_custom_call.1} parent=5 // pred_check_branch
        %419 = sbr.rel (%p417) target = $region56
      $region55: #{tpu_custom_call.1} parent=5 // pred_region
        %s420 = ssub.s32 %s24, 2
        // Predicated region
        $region57: #{tpu_custom_call.1} parent=55 // pred_check
          %p421 = pneg %p165
        $region58: #{tpu_custom_call.1} parent=55 // pred_check_branch
          %423 = sbr.rel (%p421) target = $region60
        $region59: #{tpu_custom_call.1} parent=55 // pred_region
          %s424 = sand.u32 %s150, 1
          %s425 = scalar_lea.sflag [#allocation5], %s424
          %s426 = sand.u32 %s150, 1
          %s427 = smul.addr %s426, 8
          %s428 = scalar_lea.vmem [#allocation8], %s427
          %430 = dma.done %s425, 128
        $region60: #{tpu_custom_call.1} parent=55 // pred_fallthru
          _
        // Predicated region
        $region61: #{tpu_custom_call.1} parent=55 // pred_check
          %p431 = pneg %p193
        $region62: #{tpu_custom_call.1} parent=55 // pred_check_branch
          %433 = sbr.rel (%p431) target = $region64
        $region63: #{tpu_custom_call.1} parent=55 // pred_region
          %s434 = sand.u32 %s178, 1
          %s435 = scalar_lea.sflag [#allocation10], %s434
          %s436 = sand.u32 %s178, 1
          %s437 = smul.addr %s436, 8
          %s438 = scalar_lea.vmem [#allocation9], %s437
          %440 = dma.done %s435, 128
        $region64: #{tpu_custom_call.1} parent=55 // pred_fallthru
          _
      $region56: #{tpu_custom_call.1} parent=5 // pred_fallthru
        _
    $region6: #{tpu_custom_call.1} parent=1 // loop_footer
      %s28 = sadd.s32 1, %s24
    $region7: #{tpu_custom_call.1} parent=1 // loop_footer_branch
      %23 = sbr.rel target = $region3
    $region8: #{tpu_custom_call.1} parent=1 // loop_exit
      _
    %441 = vsyncpa [#allocation4], 1
    %s442 = scalar_lea.sflag [#allocation4], 1
    %443 = vsyncpa %s442, 1
    %444 = vsyncpa [#allocation7], 1
    %s445 = scalar_lea.sflag [#allocation7], 1
    %446 = vsyncpa %s445, 1
    %447 = vsyncpa [#allocation5], 1
    %s448 = scalar_lea.sflag [#allocation5], 1
    %449 = vsyncpa %s448, 1
    %450 = vsyncpa [#allocation10], 1
    %s451 = scalar_lea.sflag [#allocation10], 1
    %452 = vsyncpa %s451, 1

</llo_original>
